<compile_context>
chip_gen: v7x
topology: tpu7x:2x2x1
jax: 0.10.0
libtpu: 0.0.40
codegen_flags: <defaults>
</compile_context>

<pallas_src>
import numpy as np
import jax
import jax.numpy as jnp
from jax.experimental import pallas as pl
from jax.experimental.pallas import tpu as pltpu


def _nn_diag_gaussian_kernel(x_ref, w_ref, b_ref, eps_ref, z_ref, logp_ref):
    # x:   (TB, D)       w: (D, 2H)       b: (1, 2H)
    # eps: (TB, S, H)    z: (TB, S, H)    logp: (TB, S)
    mean_std = (jnp.dot(x_ref[...], w_ref[...],
                        preferred_element_type=jnp.float32) + b_ref[...])
    H = mean_std.shape[-1] // 2
    mean = mean_std[:, :H]                 # lane slice (H multiple of 128)
    log_var = mean_std[:, H:]
    std = jnp.exp(0.5 * log_var)           # EUP (free slot vs VPU/MXU)

    eps = eps_ref[...]                     # (TB, S, H)

    # Broadcast mean/std over the sample axis once per batch tile.
    z = mean[:, None, :] + std[:, None, :] * eps
    z_ref[...] = z.astype(z_ref.dtype)

    # log_p = -0.5 * H * log(2*pi) - sum_h( 0.5*log_var ) - 0.5 * sum_h eps^2
    const = jnp.float32(-0.5 * H * np.log(2.0 * np.pi))
    log_std_sum = 0.5 * jnp.sum(log_var, axis=-1)        # (TB,)
    eps_sq_sum = 0.5 * jnp.sum(eps * eps, axis=-1)       # (TB, S)
    logp_ref[...] = (const - (log_std_sum[:, None] + eps_sq_sum)
                     ).astype(logp_ref.dtype)


def nn_diag_gaussian_forward(x, w, b, eps, *, batch_tile=None):
    """x: (B, D), w: (D, 2H), b: (2H,), eps: (B, S, H) -> (z, log_p).

    batch_tile (TB) must divide B and be a multiple of 8 (or equal B).
    """
    B, D = x.shape
    two_h = w.shape[1]
    H = two_h // 2
    S = eps.shape[1]
    assert eps.shape == (B, S, H)

    if batch_tile is None:
        # Large tiles amortize the ~0.35us/step overhead; double-buffered
        # (eps + z) tiles must stay well inside scoped VMEM on all gens
        # (v7x has only 64 MiB physical).
        batch_tile = B
        for cand in (512, 256, 128, 64, 32, 16, 8):
            if B % cand == 0:
                batch_tile = cand
                break
    TB = batch_tile
    assert B % TB == 0, "batch_tile must divide B"

    b2 = b.reshape(1, two_h)
    grid = (B // TB,)

    # VMEM budget: 2x (double-buffer) eps/z/x/logp tiles + resident w/b.
    f32 = 4
    tile_bytes = f32 * (2 * (2 * TB * S * H + TB * D + TB * S)
                        + 2 * (D * two_h + two_h))
    vmem_limit = int(min(max(2 * tile_bytes, 4 << 20), 32 << 20))

    cost = pl.CostEstimate(
        flops=2 * B * D * two_h + 4 * B * S * H,
        transcendentals=B * H,
        bytes_accessed=f32 * (B * D + D * two_h + two_h
                              + 2 * B * S * H + B * S),
    )

    z, logp = pl.pallas_call(
        _nn_diag_gaussian_kernel,
        grid=grid,
        in_specs=[
            pl.BlockSpec((TB, D), lambda i: (i, 0)),
            pl.BlockSpec((D, two_h), lambda i: (0, 0)),   # resident weight
            pl.BlockSpec((1, two_h), lambda i: (0, 0)),   # resident bias
            pl.BlockSpec((TB, S, H), lambda i: (i, 0, 0)),
        ],
        out_specs=[
            pl.BlockSpec((TB, S, H), lambda i: (i, 0, 0)),
            pl.BlockSpec((TB, S), lambda i: (i, 0)),
        ],
        out_shape=(
            jax.ShapeDtypeStruct((B, S, H), jnp.float32),
            jax.ShapeDtypeStruct((B, S), jnp.float32),
        ),
        compiler_params=pltpu.CompilerParams(
            dimension_semantics=("parallel",),
            vmem_limit_bytes=vmem_limit,
        ),
        cost_estimate=cost,
    )(x, w, b2, eps)
    return z, logp


def _reference_forward(x, w, b, eps):
    """Pure-JAX reference reproducing the PyTorch semantics."""
    H = w.shape[1] // 2
    mean_std = x @ w + b                                 # (B, 2H)
    mean = mean_std[:, :H][:, None, :]                   # (B, 1, H)
    std = jnp.exp(0.5 * mean_std[:, H:2 * H])[:, None, :]
    z = mean + std * eps
    log_p = (-0.5 * H * np.log(2.0 * np.pi)
             - jnp.sum(jnp.log(std) + 0.5 * eps ** 2, axis=2))
    return z, log_p


if __name__ == "__main__":
    # Small but tile-friendly shapes: batch=32, input features=128,
    # latent dim=128 (lane-dense), num_samples=8 (sublane-dense), tile=8.
    B, D_in, H, S = 32, 128, 128, 8
    TB = 8                                   # -> grid of 4 pipelined steps

    key = jax.random.PRNGKey(0)
    k_x, k_w, k_b, k_eps = jax.random.split(key, 4)

    x = jax.random.normal(k_x, (B, D_in), dtype=jnp.float32)
    # Deterministic "net" parameters (nn.Linear(D_in, 2H) equivalent,
    # weight stored transposed as (D_in, 2H) so the kernel does x @ W).
    w = jax.random.normal(k_w, (D_in, 2 * H), dtype=jnp.float32) * 0.05
    b = jax.random.normal(k_b, (2 * H,), dtype=jnp.float32) * 0.05
    # eps ~ N(0, 1) drawn outside the kernel (torch.randn equivalent).
    eps = jax.random.normal(k_eps, (B, S, H), dtype=jnp.float32)

    z, log_p = nn_diag_gaussian_forward(x, w, b, eps, batch_tile=TB)
    jax.block_until_ready((z, log_p))

    z_ref, log_p_ref = _reference_forward(x, w, b, eps)
    np.testing.assert_allclose(np.asarray(z), np.asarray(z_ref),
                               rtol=1e-5, atol=1e-5)
    np.testing.assert_allclose(np.asarray(log_p), np.asarray(log_p_ref),
                               rtol=1e-5, atol=1e-5)

    print("KERNEL_OK")
</pallas_src>

<mosaic_0001>
module attributes {stable_mosaic.version = 11 : i64} {
  func.func @_nn_diag_gaussian_kernel(%arg0: i32, %arg1: memref<8x128xf32, #tpu.memory_space<vmem>>, %arg2: memref<128x256xf32, #tpu.memory_space<vmem>>, %arg3: memref<1x256xf32, #tpu.memory_space<vmem>>, %arg4: memref<8x8x128xf32, #tpu.memory_space<vmem>>, %arg5: memref<8x8x128xf32, #tpu.memory_space<vmem>>, %arg6: memref<8x8xf32, #tpu.memory_space<vmem>>) attributes {dimension_semantics = [#tpu.dimension_semantics<parallel>], iteration_bounds = array<i64: 4>, scalar_prefetch = 0 : i64, scratch_operands = 0 : i64, tpu.core_type = #tpu.core_type<tc>, window_params = [{transform_indices = @transform_0, window_bounds = array<i64: 8, 128>}, {pipeline_mode = #tpu.pipeline_mode<synchronous>, transform_indices = @transform_1, window_bounds = array<i64: 128, 256>}, {pipeline_mode = #tpu.pipeline_mode<synchronous>, transform_indices = @transform_2, window_bounds = array<i64: 1, 256>}, {transform_indices = @transform_3, window_bounds = array<i64: 8, 8, 128>}, {transform_indices = @transform_4, window_bounds = array<i64: 8, 8, 128>}, {transform_indices = @transform_5, window_bounds = array<i64: 8, 8>}]} {
    %c0 = arith.constant 0 : index
    %c0_0 = arith.constant 0 : index
    %0 = vector.load %arg1[%c0, %c0_0] : memref<8x128xf32, #tpu.memory_space<vmem>>, vector<8x128xf32>
    %c0_1 = arith.constant 0 : index
    %c0_2 = arith.constant 0 : index
    %1 = vector.load %arg2[%c0_1, %c0_2] : memref<128x256xf32, #tpu.memory_space<vmem>>, vector<128x256xf32>
    %cst = arith.constant dense<0.000000e+00> : vector<8x256xf32>
    %2 = tpu.matmul %0, %1, %cst {dimension_numbers = #tpu.dot_dimension_numbers<[1], [0], [0], [1], [0, 0, 1, 1], [], []>} : vector<8x128xf32>, vector<128x256xf32>, vector<8x256xf32> -> vector<8x256xf32>
    %c0_3 = arith.constant 0 : index
    %c0_4 = arith.constant 0 : index
    %3 = vector.load %arg3[%c0_3, %c0_4] : memref<1x256xf32, #tpu.memory_space<vmem>>, vector<1x256xf32>
    %4 = vector.broadcast %3 : vector<1x256xf32> to vector<8x256xf32>
    %5 = arith.addf %2, %4 : vector<8x256xf32>
    %6 = vector.extract_strided_slice %5 {offsets = [0, 0], sizes = [8, 128], strides = [1, 1]} : vector<8x256xf32> to vector<8x128xf32>
    %7 = vector.extract_strided_slice %5 {offsets = [0, 128], sizes = [8, 128], strides = [1, 1]} : vector<8x256xf32> to vector<8x128xf32>
    %cst_5 = arith.constant 5.000000e-01 : f32
    %8 = vector.broadcast %cst_5 : f32 to vector<8x128xf32>
    %9 = arith.mulf %8, %7 : vector<8x128xf32>
    %10 = math.exp %9 : vector<8x128xf32>
    %c0_6 = arith.constant 0 : index
    %c0_7 = arith.constant 0 : index
    %c0_8 = arith.constant 0 : index
    %11 = vector.load %arg4[%c0_6, %c0_7, %c0_8] : memref<8x8x128xf32, #tpu.memory_space<vmem>>, vector<8x8x128xf32>
    %12 = vector.shape_cast %6 : vector<8x128xf32> to vector<8x1x128xf32>
    %13 = vector.shape_cast %10 : vector<8x128xf32> to vector<8x1x128xf32>
    %14 = vector.broadcast %13 : vector<8x1x128xf32> to vector<8x8x128xf32>
    %15 = arith.mulf %14, %11 : vector<8x8x128xf32>
    %16 = vector.broadcast %12 : vector<8x1x128xf32> to vector<8x8x128xf32>
    %17 = arith.addf %16, %15 : vector<8x8x128xf32>
    %c0_9 = arith.constant 0 : index
    %c0_10 = arith.constant 0 : index
    %c0_11 = arith.constant 0 : index
    %18 = vector.load %arg5[%c0_9, %c0_10, %c0_11] : memref<8x8x128xf32, #tpu.memory_space<vmem>>, vector<8x8x128xf32>
    tpu.vector_store %arg5[%c0_9, %c0_10, %c0_11], %17 {strides = array<i32>} : memref<8x8x128xf32, #tpu.memory_space<vmem>>, vector<8x8x128xf32>,
    %cst_12 = arith.constant dense<0.000000e+00> : vector<8xf32>
    %19 = vector.multi_reduction <add>, %7, %cst_12 [1] : vector<8x128xf32> to vector<8xf32>
    %cst_13 = arith.constant 5.000000e-01 : f32
    %20 = vector.broadcast %cst_13 : f32 to vector<8xf32>
    %21 = arith.mulf %20, %19 : vector<8xf32>
    %22 = arith.mulf %11, %11 : vector<8x8x128xf32>
    %cst_14 = arith.constant dense<0.000000e+00> : vector<8x8xf32>
    %23 = vector.multi_reduction <add>, %22, %cst_14 [2] : vector<8x8x128xf32> to vector<8x8xf32>
    %cst_15 = arith.constant 5.000000e-01 : f32
    %24 = vector.broadcast %cst_15 : f32 to vector<8x8xf32>
    %25 = arith.mulf %24, %23 : vector<8x8xf32>
    %26 = vector.shape_cast %21 : vector<8xf32> to vector<8x1xf32>
    %27 = vector.broadcast %26 : vector<8x1xf32> to vector<8x8xf32>
    %28 = arith.addf %27, %25 : vector<8x8xf32>
    %cst_16 = arith.constant -117.62413 : f32
    %29 = vector.broadcast %cst_16 : f32 to vector<8x8xf32>
    %30 = arith.subf %29, %28 : vector<8x8xf32>
    %c0_17 = arith.constant 0 : index
    %c0_18 = arith.constant 0 : index
    %31 = vector.load %arg6[%c0_17, %c0_18] : memref<8x8xf32, #tpu.memory_space<vmem>>, vector<8x8xf32>
    tpu.vector_store %arg6[%c0_17, %c0_18], %30 {strides = array<i32>} : memref<8x8xf32, #tpu.memory_space<vmem>>, vector<8x8xf32>,
    return
  }
  func.func @transform_0(%arg0: i32) -> (i32, i32) {
    %c0_i32 = arith.constant 0 : i32
    %c0_i32_0 = arith.constant 0 : i32
    return %arg0, %c0_i32 : i32, i32
  }
  func.func @transform_1(%arg0: i32) -> (i32, i32) {
    %c0_i32 = arith.constant 0 : i32
    %c0_i32_0 = arith.constant 0 : i32
    %c0_i32_1 = arith.constant 0 : i32
    return %c0_i32, %c0_i32_0 : i32, i32
  }
  func.func @transform_2(%arg0: i32) -> (i32, i32) {
    %c0_i32 = arith.constant 0 : i32
    %c0_i32_0 = arith.constant 0 : i32
    %c0_i32_1 = arith.constant 0 : i32
    return %c0_i32, %c0_i32_0 : i32, i32
  }
  func.func @transform_3(%arg0: i32) -> (i32, i32, i32) {
    %c0_i32 = arith.constant 0 : i32
    %c0_i32_0 = arith.constant 0 : i32
    %c0_i32_1 = arith.constant 0 : i32
    return %arg0, %c0_i32, %c0_i32_0 : i32, i32, i32
  }
  func.func @transform_4(%arg0: i32) -> (i32, i32, i32) {
    %c0_i32 = arith.constant 0 : i32
    %c0_i32_0 = arith.constant 0 : i32
    %c0_i32_1 = arith.constant 0 : i32
    return %arg0, %c0_i32, %c0_i32_0 : i32, i32, i32
  }
  func.func @transform_5(%arg0: i32) -> (i32, i32) {
    %c0_i32 = arith.constant 0 : i32
    %c0_i32_0 = arith.constant 0 : i32
    return %arg0, %c0_i32 : i32, i32
  }
}

</mosaic_0001>

<llo_original>
// kernel: tpu_custom_call.1
$region0: #{tpu_custom_call.1}
  #allocation0 [shape = 'u32[]', space=smem, size = 0x4, offset = 0x4, fixed_abs, tag = 'smem constant byte address 0x4 - core index']
  #allocation1 [shape = 'u32[144,128]{1,0:T(1,128)}', space=vmem, size = 0x12000, scoped, tag = 'internal scratch']
  %s0 = inlined_call_operand.hbm [shape: f32[32,128], index: 0, kind: input, shape index: {}]
  %s1 = inlined_call_operand.hbm [shape: f32[128,256], index: 1, kind: input, shape index: {}]
  %s2 = inlined_call_operand.vmem [shape: f32[1,256], index: 2, kind: input, shape index: {}]
  %s3 = inlined_call_operand.hbm [shape: f32[32,8,128], index: 3, kind: input, shape index: {}]
  %s4 = inlined_call_operand.hbm [shape: f32[32,8,128], index: 4, kind: output, shape index: {0}]
  %s5 = inlined_call_operand.vmem [shape: f32[32,8], index: 5, kind: output, shape index: {1}]
  %6 = xla_tuple %s4, %s5
  %s7 = sld [smem:[#allocation0]]
  $region69: #{tpu_custom_call.1} parent=0
    _
  %s9 = ssub.s32 1, %s7
  %s10 = scalar_select 0, %s9, %s7
  $region1: #{tpu_custom_call.1} parent=0
    #allocation2 [shape = 'u8[8192]{0}', space=vmem, size = 0x2000, scoped, tag = 'input window, operand 0']
    #allocation3 [shape = 's32[2]{0}', space=sflag, size = 0x8, scoped, tag = 'scoped memory for tpu_custom_call.1']
    #allocation4 [shape = 's32[2]{0}', space=sflag, size = 0x8, scoped, tag = 'scoped memory for tpu_custom_call.1']
    #allocation5 [shape = 'u8[131072]{0}', space=vmem, size = 0x20000, scoped, tag = 'input window, operand 1, single buffered']
    #allocation6 [shape = 's32[1]{0}', space=sflag, size = 0x4, scoped, tag = 'scoped memory for tpu_custom_call.1']
    #allocation7 [shape = 'u8[65536]{0}', space=vmem, size = 0x10000, scoped, tag = 'input window, operand 3']
    #allocation8 [shape = 'u8[65536]{0}', space=vmem, size = 0x10000, scoped, tag = 'output window, operand 0']
    %11 = vsyncpa [#allocation3], 0
    %s12 = scalar_lea.sflag [#allocation3], 1
    %13 = vsyncpa %s12, 0
    %14 = vsyncpa [#allocation6], 0
    %15 = vsyncpa [#allocation4], 0
    %s16 = scalar_lea.sflag [#allocation4], 1
    %17 = vsyncpa %s16, 0
    loop: start=0, step=1, limit=6
    $region2: #{tpu_custom_call.1} parent=1 // loop_pre_header
      _
    $region3: #{tpu_custom_call.1} parent=1 // loop_header
      %s19 = sphi 0, %s23
      %p20 = scmp.ge.s32.totalorder %s19, 6
      %s29 = sphi 0, %s31
      %s32 = sphi 0, %s29
      %s33 = sphi 0, %s32
      %s49 = sphi 0, %s33
      %s53 = sphi 0, %s53
      %s55 = sphi 0, %s53
      %s56 = sphi 0, %s55
      %s70 = sphi 0, %s56
      %s74 = sphi 0, %s74
      %s76 = sphi 0, %s74
      %s77 = sphi 0, %s76
      %s91 = sphi 0, %s77
      %s97 = sphi 0, %s99
      %s100 = sphi 0, %s97
      %s101 = sphi 0, %s100
      %s117 = sphi 0, %s101
      %s123 = sphi 0, %s125
      %s126 = sphi 0, %s123
      %s127 = sphi 0, %s126
      %s143 = sphi 0, %s127
      %s149 = sphi 0, %s151
      %s152 = sphi 0, %s149
      %s153 = sphi 0, %s152
      %s169 = sphi 0, %s153
    $region4: #{tpu_custom_call.1} parent=1 // loop_header_branch
      %22 = sbr.rel (%p20) target = $region8
    $region5: #{tpu_custom_call.1} parent=1 // loop_body
      %s24 = ssub.s32 %s19, 1
      %s25 = ssub.s32 %s19, 2
      %s26 = sadd.s32 %s19, 1
      %s27 = ssub.s32 %s19, %s26
      %p28 = scmp.eq.s32.totalorder %s27, 0
      %s30 = sadd.s32 %s29, 1
      %s31 = scalar_select %p28, %s29, %s30
      %p34 = pneg %p28
      %p35 = scmp.eq.s32.totalorder %s19, 3
      %p36 = por %p34, %p35
      %p37 = scmp.ne.s32.totalorder %s29, %s32
      %p38 = scmp.eq.s32.totalorder %s19, 0
      %p39 = por %p37, %p38
      %p40 = scmp.ne.s32.totalorder %s29, %s32
      %p41 = scmp.eq.s32.totalorder %s24, 3
      %p42 = por %p40, %p41
      %p43 = scmp.ne.s32.totalorder %s32, %s33
      %p44 = scmp.eq.s32.totalorder %s24, 0
      %p45 = por %p43, %p44
      %p46 = scmp.ne.s32.totalorder %s32, %s33
      %p47 = scmp.eq.s32.totalorder %s25, 3
      %p48 = por %p46, %p47
      %p50 = scmp.ne.s32.totalorder %s33, %s49
      %p51 = scmp.eq.s32.totalorder %s25, 0
      %p52 = por %p50, %p51
      %s54 = sadd.s32 %s53, 1
      %p57 = scmp.eq.s32.totalorder %s19, 3
      %p58 = scmp.ne.s32.totalorder %s53, %s55
      %p59 = scmp.eq.s32.totalorder %s19, 0
      %p60 = por %p58, %p59
      %p61 = scmp.ne.s32.totalorder %s53, %s55
      %p62 = scmp.eq.s32.totalorder %s24, 3
      %p63 = por %p61, %p62
      %p64 = scmp.ne.s32.totalorder %s55, %s56
      %p65 = scmp.eq.s32.totalorder %s24, 0
      %p66 = por %p64, %p65
      %p67 = scmp.ne.s32.totalorder %s55, %s56
      %p68 = scmp.eq.s32.totalorder %s25, 3
      %p69 = por %p67, %p68
      %p71 = scmp.ne.s32.totalorder %s56, %s70
      %p72 = scmp.eq.s32.totalorder %s25, 0
      %p73 = por %p71, %p72
      %s75 = sadd.s32 %s74, 1
      %p78 = scmp.eq.s32.totalorder %s19, 3
      %p79 = scmp.ne.s32.totalorder %s74, %s76
      %p80 = scmp.eq.s32.totalorder %s19, 0
      %p81 = por %p79, %p80
      %p82 = scmp.ne.s32.totalorder %s74, %s76
      %p83 = scmp.eq.s32.totalorder %s24, 3
      %p84 = por %p82, %p83
      %p85 = scmp.ne.s32.totalorder %s76, %s77
      %p86 = scmp.eq.s32.totalorder %s24, 0
      %p87 = por %p85, %p86
      %p88 = scmp.ne.s32.totalorder %s76, %s77
      %p89 = scmp.eq.s32.totalorder %s25, 3
      %p90 = por %p88, %p89
      %p92 = scmp.ne.s32.totalorder %s77, %s91
      %p93 = scmp.eq.s32.totalorder %s25, 0
      %p94 = por %p92, %p93
      %s95 = ssub.s32 %s19, %s26
      %p96 = scmp.eq.s32.totalorder %s95, 0
      %s98 = sadd.s32 %s97, 1
      %s99 = scalar_select %p96, %s97, %s98
      %p102 = pneg %p96
      %p103 = scmp.eq.s32.totalorder %s19, 3
      %p104 = por %p102, %p103
      %p105 = scmp.ne.s32.totalorder %s97, %s100
      %p106 = scmp.eq.s32.totalorder %s19, 0
      %p107 = por %p105, %p106
      %p108 = scmp.ne.s32.totalorder %s97, %s100
      %p109 = scmp.eq.s32.totalorder %s24, 3
      %p110 = por %p108, %p109
      %p111 = scmp.ne.s32.totalorder %s100, %s101
      %p112 = scmp.eq.s32.totalorder %s24, 0
      %p113 = por %p111, %p112
      %p114 = scmp.ne.s32.totalorder %s100, %s101
      %p115 = scmp.eq.s32.totalorder %s25, 3
      %p116 = por %p114, %p115
      %p118 = scmp.ne.s32.totalorder %s101, %s117
      %p119 = scmp.eq.s32.totalorder %s25, 0
      %p120 = por %p118, %p119
      %s121 = ssub.s32 %s19, %s26
      %p122 = scmp.eq.s32.totalorder %s121, 0
      %s124 = sadd.s32 %s123, 1
      %s125 = scalar_select %p122, %s123, %s124
      %p128 = pneg %p122
      %p129 = scmp.eq.s32.totalorder %s19, 3
      %p130 = por %p128, %p129
      %p131 = scmp.ne.s32.totalorder %s123, %s126
      %p132 = scmp.eq.s32.totalorder %s19, 0
      %p133 = por %p131, %p132
      %p134 = scmp.ne.s32.totalorder %s123, %s126
      %p135 = scmp.eq.s32.totalorder %s24, 3
      %p136 = por %p134, %p135
      %p137 = scmp.ne.s32.totalorder %s126, %s127
      %p138 = scmp.eq.s32.totalorder %s24, 0
      %p139 = por %p137, %p138
      %p140 = scmp.ne.s32.totalorder %s126, %s127
      %p141 = scmp.eq.s32.totalorder %s25, 3
      %p142 = por %p140, %p141
      %p144 = scmp.ne.s32.totalorder %s127, %s143
      %p145 = scmp.eq.s32.totalorder %s25, 0
      %p146 = por %p144, %p145
      %s147 = ssub.s32 %s19, %s26
      %p148 = scmp.eq.s32.totalorder %s147, 0
      %s150 = sadd.s32 %s149, 1
      %s151 = scalar_select %p148, %s149, %s150
      %p154 = pneg %p148
      %p155 = scmp.eq.s32.totalorder %s19, 3
      %p156 = por %p154, %p155
      %p157 = scmp.ne.s32.totalorder %s149, %s152
      %p158 = scmp.eq.s32.totalorder %s19, 0
      %p159 = por %p157, %p158
      %p160 = scmp.ne.s32.totalorder %s149, %s152
      %p161 = scmp.eq.s32.totalorder %s24, 3
      %p162 = por %p160, %p161
      %p163 = scmp.ne.s32.totalorder %s152, %s153
      %p164 = scmp.eq.s32.totalorder %s24, 0
      %p165 = por %p163, %p164
      %p166 = scmp.ne.s32.totalorder %s152, %s153
      %p167 = scmp.eq.s32.totalorder %s25, 3
      %p168 = por %p166, %p167
      %p170 = scmp.ne.s32.totalorder %s153, %s169
      %p171 = scmp.eq.s32.totalorder %s25, 0
      %p172 = por %p170, %p171
      %p173 = scmp.le.s32.totalorder 1, %s19
      %p174 = scmp.lt.s32.totalorder %s19, 5
      %p175 = pnand %p173, %p174
      %p176 = pneg %p175
      // Predicated region
      $region9: #{tpu_custom_call.1} parent=5 // pred_check
        _
      $region10: #{tpu_custom_call.1} parent=5 // pred_check_branch
        %178 = sbr.rel (%p175) target = $region12
      $region11: #{tpu_custom_call.1} parent=5 // pred_region
        %s179 = ssub.s32 %s19, 1
        // Predicated region
        $region13: #{tpu_custom_call.1} parent=11 // pred_check
          %p180 = pneg %p66
        $region14: #{tpu_custom_call.1} parent=11 // pred_check_branch
          %182 = sbr.rel (%p180) target = $region16
        $region15: #{tpu_custom_call.1} parent=11 // pred_region
          %s184 = ssub.s32 4096, 4096
          %185 = vsyncadd [#allocation6], %s184
          %s186 = sshll.u32 [#allocation5], 4
          %s187 = int_to_ptr.vmem [resolvable:$true] %s186
          %192 = dma.hbm_to_vmem [thread:$0]  %s1, 4096, %s187, [#allocation6], 256, 256, 16
        $region16: #{tpu_custom_call.1} parent=11 // pred_fallthru
          _
        // Predicated region
        $region17: #{tpu_custom_call.1} parent=11 // pred_check
          %p193 = pneg %p87
        $region18: #{tpu_custom_call.1} parent=11 // pred_check_branch
          %195 = sbr.rel (%p193) target = $region20
        $region19: #{tpu_custom_call.1} parent=11 // pred_region
          _
        $region20: #{tpu_custom_call.1} parent=11 // pred_fallthru
          _
      $region12: #{tpu_custom_call.1} parent=5 // pred_fallthru
        _
      %p196 = scmp.lt.s32.totalorder %s19, 4
      // Predicated region
      $region21: #{tpu_custom_call.1} parent=5 // pred_check
        %p197 = pneg %p196
      $region22: #{tpu_custom_call.1} parent=5 // pred_check_branch
        %199 = sbr.rel (%p197) target = $region24
      $region23: #{tpu_custom_call.1} parent=5 // pred_region
        // Predicated region
        $region25: #{tpu_custom_call.1} parent=23 // pred_check
          %p200 = pneg %p39
        $region26: #{tpu_custom_call.1} parent=23 // pred_check_branch
          %202 = sbr.rel (%p200) target = $region28
        $region27: #{tpu_custom_call.1} parent=23 // pred_region
          %s203 = sand.u32 %s19, 1
          %s204 = scalar_lea.sflag [#allocation3], %s203
          %s205 = sand.u32 %s29, 1
          %s206 = smul.addr %s205, 8
          %s207 = scalar_lea.vmem [#allocation2], %s206
          %s209 = ssub.s32 128, 128
          %210 = vsyncadd %s204, %s209
          %s211 = smul.addr %s19, 128
          %s212 = scalar_lea.hbm %s0, %s211
          %s214 = sshll.u32 %s207, 4
          %s215 = int_to_ptr.vmem [resolvable:$true] %s214
          %217 = dma.hbm_to_vmem [thread:$0]  %s212, 128, %s215, %s204
        $region28: #{tpu_custom_call.1} parent=23 // pred_fallthru
          _
        // Predicated region
        $region29: #{tpu_custom_call.1} parent=23 // pred_check
          %p218 = pneg %p107
        $region30: #{tpu_custom_call.1} parent=23 // pred_check_branch
          %220 = sbr.rel (%p218) target = $region32
        $region31: #{tpu_custom_call.1} parent=23 // pred_region
          %s221 = sand.u32 %s19, 1
          %s222 = scalar_lea.sflag [#allocation3], %s221
          %s223 = sand.u32 %s97, 1
          %s224 = smul.addr %s223, 64
          %s225 = scalar_lea.vmem [#allocation7], %s224
          %s226 = smul.u32 8, %s19
          %s228 = ssub.s32 1024, 1024
          %229 = vsyncadd %s222, %s228
          %s230 = smul.addr %s226, 128
          %s231 = scalar_lea.hbm %s3, %s230
          %s232 = sshll.u32 %s225, 4
          %s233 = int_to_ptr.vmem [resolvable:$true] %s232
          %238 = dma.hbm_to_vmem [thread:$0]  %s231, 1024, %s233, %s222, 128, 128, 8
        $region32: #{tpu_custom_call.1} parent=23 // pred_fallthru
          _
      $region24: #{tpu_custom_call.1} parent=5 // pred_fallthru
        _
      %p239 = scmp.le.s32.totalorder 1, %s19
      %p240 = scmp.lt.s32.totalorder %s19, 5
      %p241 = pnand %p239, %p240
      %p242 = pneg %p241
      // Predicated region
      $region33: #{tpu_custom_call.1} parent=5 // pred_check
        _
      $region34: #{tpu_custom_call.1} parent=5 // pred_check_branch
        %244 = sbr.rel (%p241) target = $region36
      $region35: #{tpu_custom_call.1} parent=5 // pred_region
        %s245 = ssub.s32 %s19, 1
        %s246 = sand.u32 %s24, 1
        %s247 = scalar_lea.sflag [#allocation3], %s246
        %s248 = sand.u32 %s32, 1
        %s249 = smul.addr %s248, 8
        %s250 = scalar_lea.vmem [#allocation2], %s249
        // Predicated region
        $region37: #{tpu_custom_call.1} parent=35 // pred_check
          %p251 = pneg %p45
        $region38: #{tpu_custom_call.1} parent=35 // pred_check_branch
          %253 = sbr.rel (%p251) target = $region40
        $region39: #{tpu_custom_call.1} parent=35 // pred_region
          %254 = dma.done %s247, 128
        $region40: #{tpu_custom_call.1} parent=35 // pred_fallthru
          _
        // Predicated region
        $region41: #{tpu_custom_call.1} parent=35 // pred_check
          %p255 = pneg %p66
        $region42: #{tpu_custom_call.1} parent=35 // pred_check_branch
          %257 = sbr.rel (%p255) target = $region44
        $region43: #{tpu_custom_call.1} parent=35 // pred_region
          %258 = dma.done [#allocation6], 4096
        $region44: #{tpu_custom_call.1} parent=35 // pred_fallthru
          _
        %s259 = sand.u32 %s24, 1
        %s260 = scalar_lea.sflag [#allocation3], %s259
        %s261 = sand.u32 %s100, 1
        %s262 = smul.addr %s261, 64
        %s263 = scalar_lea.vmem [#allocation7], %s262
        // Predicated region
        $region45: #{tpu_custom_call.1} parent=35 // pred_check
          %p264 = pneg %p113
        $region46: #{tpu_custom_call.1} parent=35 // pred_check_branch
          %266 = sbr.rel (%p264) target = $region48
        $region47: #{tpu_custom_call.1} parent=35 // pred_region
          %267 = dma.done %s260, 1024
        $region48: #{tpu_custom_call.1} parent=35 // pred_fallthru
          _
        %s268 = sand.u32 %s24, 1
        %s269 = scalar_lea.sflag [#allocation3], %s268
        %s270 = sand.u32 %s32, 1
        %s271 = smul.addr %s270, 8
        %s272 = scalar_lea.vmem [#allocation2], %s271
        %p273 = pneg %p45
        %p274 = pneg %p42
        %p275 = pneg %p66
        %p276 = pneg %p63
        %p277 = pneg %p87
        %p278 = pneg %p84
        %s279 = sand.u32 %s24, 1
        %s280 = scalar_lea.sflag [#allocation3], %s279
        %s281 = sand.u32 %s100, 1
        %s282 = smul.addr %s281, 64
        %s283 = scalar_lea.vmem [#allocation7], %s282
        %p284 = pneg %p113
        %p285 = pneg %p110
        %p286 = pneg %p139
        %p287 = pneg %p136
        %s288 = sand.u32 %s126, 1
        %s289 = scalar_lea.sflag [#allocation4], %s288
        %s290 = sand.u32 %s126, 1
        %s291 = smul.addr %s290, 64
        %s292 = scalar_lea.vmem [#allocation8], %s291
        %p293 = pneg %p165
        %p294 = pneg %p162
        %p295 = scmp.lt.s32.totalorder %s24, 3
        %s296 = scalar_select %p295, %s24, 3
        %s297 = smul.addr %s296, 8
        %s298 = scalar_lea.vmem %s5, %s297
        %s299 = smul.u32 8, %s24
        %s300 = smul.u32 8, %s24
        %p301 = scmp.lt.s32.totalorder %s24, 3
        %s302 = scalar_select %p301, %s24, 3
        %s303 = smul.addr %s302, 8
        %s304 = scalar_lea.vmem %s5, %s303
        %v305 = vld [vmem:[%s250] sm:$0xff]
        %v306 = vld [vmem:[#allocation5] sm:$0xff]
        %v307 = vld [vmem:[#allocation5 + $0x8] sm:$0xff]
        %v308 = vld [vmem:[#allocation5 + $0x10] sm:$0xff]
        %v309 = vld [vmem:[#allocation5 + $0x18] sm:$0xff]
        %v310 = vld [vmem:[#allocation5 + $0x20] sm:$0xff]
        %v311 = vld [vmem:[#allocation5 + $0x28] sm:$0xff]
        %v312 = vld [vmem:[#allocation5 + $0x30] sm:$0xff]
        %v313 = vld [vmem:[#allocation5 + $0x38] sm:$0xff]
        %v314 = vld [vmem:[#allocation5 + $0x40] sm:$0xff]
        %v315 = vld [vmem:[#allocation5 + $0x48] sm:$0xff]
        %v316 = vld [vmem:[#allocation5 + $0x50] sm:$0xff]
        %v317 = vld [vmem:[#allocation5 + $0x58] sm:$0xff]
        %v318 = vld [vmem:[#allocation5 + $0x60] sm:$0xff]
        %v319 = vld [vmem:[#allocation5 + $0x68] sm:$0xff]
        %v320 = vld [vmem:[#allocation5 + $0x70] sm:$0xff]
        %v321 = vld [vmem:[#allocation5 + $0x78] sm:$0xff]
        %v322 = vld [vmem:[#allocation5 + $0x80] sm:$0xff]
        %v323 = vld [vmem:[#allocation5 + $0x88] sm:$0xff]
        %v324 = vld [vmem:[#allocation5 + $0x90] sm:$0xff]
        %v325 = vld [vmem:[#allocation5 + $0x98] sm:$0xff]
        %v326 = vld [vmem:[#allocation5 + $0xa0] sm:$0xff]
        %v327 = vld [vmem:[#allocation5 + $0xa8] sm:$0xff]
        %v328 = vld [vmem:[#allocation5 + $0xb0] sm:$0xff]
        %v329 = vld [vmem:[#allocation5 + $0xb8] sm:$0xff]
        %v330 = vld [vmem:[#allocation5 + $0xc0] sm:$0xff]
        %v331 = vld [vmem:[#allocation5 + $0xc8] sm:$0xff]
        %v332 = vld [vmem:[#allocation5 + $0xd0] sm:$0xff]
        %v333 = vld [vmem:[#allocation5 + $0xd8] sm:$0xff]
        %v334 = vld [vmem:[#allocation5 + $0xe0] sm:$0xff]
        %v335 = vld [vmem:[#allocation5 + $0xe8] sm:$0xff]
        %v336 = vld [vmem:[#allocation5 + $0xf0] sm:$0xff]
        %v337 = vld [vmem:[#allocation5 + $0xf8] sm:$0xff]
        %v338 = vld [vmem:[%s2] sm:$0x3]
        %v340 = vlaneseq
        %v341 = vshrl.u32 %v340, 7
        %v342 = vsub.s32 0, %v341
        %v343 = vrot.slane %v338, %v342
        %v344 = vlaneseq
        %v345 = vshrl.u32 %v344, 7
        %v346 = vsub.s32 1, %v345
        %v347 = vrot.slane %v338, %v346
        %350 = vmatprep.subr.mxu0 %v307
        %351 = vmatpush1.msra.mxu0 %v306
        %352 = vmatprep.subr.mxu0 %v309
        %353 = vmatpush1.msra.mxu0 %v308
        %354 = vmatprep.subr.mxu0 %v311
        %355 = vmatpush1.msra.mxu0 %v310
        %356 = vmatprep.subr.mxu0 %v313
        %357 = vmatpush1.msra.mxu0 %v312
        %358 = vmatprep.subr.mxu0 %v315
        %359 = vmatpush1.msra.mxu0 %v314
        %360 = vmatprep.subr.mxu0 %v317
        %361 = vmatpush1.msra.mxu0 %v316
        %362 = vmatprep.subr.mxu0 %v319
        %363 = vmatpush1.msra.mxu0 %v318
        %364 = vmatprep.subr.mxu0 %v321
        %365 = vmatpush1.msra.mxu0 %v320
        %366 = vmatprep.subr.mxu0 %v323
        %367 = vmatpush1.msra.mxu0 %v322
        %368 = vmatprep.subr.mxu0 %v325
        %369 = vmatpush1.msra.mxu0 %v324
        %370 = vmatprep.subr.mxu0 %v327
        %371 = vmatpush1.msra.mxu0 %v326
        %372 = vmatprep.subr.mxu0 %v329
        %373 = vmatpush1.msra.mxu0 %v328
        %374 = vmatprep.subr.mxu0 %v331
        %375 = vmatpush1.msra.mxu0 %v330
        %376 = vmatprep.subr.mxu0 %v333
        %377 = vmatpush1.msra.mxu0 %v332
        %378 = vmatprep.subr.mxu0 %v335
        %379 = vmatpush1.msra.mxu0 %v334
        %380 = vmatprep.subr.mxu0 %v337
        %381 = vmatpush1.msra.mxu0 %v336
        %382 = vmatprep.subr.mxu0 0.0
        %383 = vmatpush1.msra.mxu0 0.0
        %384 = vmatprep.subr.mxu0 0.0
        %385 = vmatpush1.msra.mxu0 0.0
        %386 = vmatprep.subr.mxu0 0.0
        %387 = vmatpush1.msra.mxu0 0.0
        %388 = vmatprep.subr.mxu0 0.0
        %389 = vmatpush1.msra.mxu0 0.0
        %390 = vmatprep.subr.mxu0 0.0
        %391 = vmatpush1.msra.mxu0 0.0
        %392 = vmatprep.subr.mxu0 0.0
        %393 = vmatpush1.msra.mxu0 0.0
        %394 = vmatprep.subr.mxu0 0.0
        %395 = vmatpush1.msra.mxu0 0.0
        %396 = vmatprep.subr.mxu0 0.0
        %397 = vmatpush1.msra.mxu0 0.0
        %398 = vmatprep.subr.mxu0 0.0
        %399 = vmatpush1.msra.mxu0 0.0
        %400 = vmatprep.subr.mxu0 0.0
        %401 = vmatpush1.msra.mxu0 0.0
        %402 = vmatprep.subr.mxu0 0.0
        %403 = vmatpush1.msra.mxu0 0.0
        %404 = vmatprep.subr.mxu0 0.0
        %405 = vmatpush1.msra.mxu0 0.0
        %406 = vmatprep.subr.mxu0 0.0
        %407 = vmatpush1.msra.mxu0 0.0
        %408 = vmatprep.subr.mxu0 0.0
        %409 = vmatpush1.msra.mxu0 0.0
        %410 = vmatprep.subr.mxu0 0.0
        %411 = vmatpush1.msra.mxu0 0.0
        %412 = vmatprep.subr.mxu0 0.0
        %413 = vmatpush1.msra.mxu0 0.0
        %414 = vmatprep.mubr.f32.mxu0 0.0
        %415 = vmatmul.mubr.f32.gmra.mrb[0].mxu0 %v305
        %v416 = vpop.f32.mrb[0].mxu0
        %v417 = vadd.f32 %v343, %v416
        %v418 = vpop.f32.mrb[0].mxu0
        %v419 = vadd.f32 %v347, %v418
        %420 = vdwg.mxu0
        %v421 = vmul.f32 %v419, 0.5
        %v422 = vmul.f32 %v421, 1.442695
        %v423 = vpow.pop %v422
        %v424 = vld [vmem:[%s263] sm:$0xff]
        %v425 = vld [vmem:[%s263 + $0x8] sm:$0xff]
        %v426 = vld [vmem:[%s263 + $0x10] sm:$0xff]
        %v427 = vld [vmem:[%s263 + $0x18] sm:$0xff]
        %v428 = vld [vmem:[%s263 + $0x20] sm:$0xff]
        %v429 = vld [vmem:[%s263 + $0x28] sm:$0xff]
        %v430 = vld [vmem:[%s263 + $0x30] sm:$0xff]
        %v431 = vld [vmem:[%s263 + $0x38] sm:$0xff]
        %v433 = vcombine.high %v417, %v417
        %v435 = vunpack.c.l.s4 1966171168
        %v436 = vunpack.c.0.s8 %v435
        %v437 = vlaneseq
        %v438 = vshrl.u32 %v437, 7
        %v439 = vsub.s32 %v436, %v438
        %v440 = vrot.slane %v417, %v439
        %v442 = vunpack.c.l.s4 1966171168
        %v443 = vunpack.c.0.s8 %v442
        %v444 = vlaneseq
        %v445 = vshrl.u32 %v444, 7
        %v446 = vsub.s32 %v443, %v445
        %v447 = vrot.slane %v433, %v446
        %v448 = vcombine.high %v440, %v440
        %v449 = vcombine.high %v447, %v447
        %v451 = vunpack.c.l.s4 1966171168
        %v452 = vunpack.c.0.s8 %v451
        %v453 = vlaneseq
        %v454 = vshrl.u32 %v453, 7
        %v455 = vsub.s32 %v452, %v454
        %v456 = vrot.slane %v440, %v455
        %v458 = vunpack.c.l.s4 1966171168
        %v459 = vunpack.c.0.s8 %v458
        %v460 = vlaneseq
        %v461 = vshrl.u32 %v460, 7
        %v462 = vsub.s32 %v459, %v461
        %v463 = vrot.slane %v447, %v462
        %v465 = vunpack.c.l.s4 1966171168
        %v466 = vunpack.c.0.s8 %v465
        %v467 = vlaneseq
        %v468 = vshrl.u32 %v467, 7
        %v469 = vsub.s32 %v466, %v468
        %v470 = vrot.slane %v448, %v469
        %v472 = vunpack.c.l.s4 1966171168
        %v473 = vunpack.c.0.s8 %v472
        %v474 = vlaneseq
        %v475 = vshrl.u32 %v474, 7
        %v476 = vsub.s32 %v473, %v475
        %v477 = vrot.slane %v449, %v476
        %v478 = vcombine.high %v456, %v456
        %v479 = vcombine.high %v463, %v463
        %v480 = vcombine.high %v470, %v470
        %v481 = vcombine.high %v477, %v477
        %v483 = vcombine.high %v423, %v423
        %v485 = vunpack.c.l.s4 1966171168
        %v486 = vunpack.c.0.s8 %v485
        %v487 = vlaneseq
        %v488 = vshrl.u32 %v487, 7
        %v489 = vsub.s32 %v486, %v488
        %v490 = vrot.slane %v423, %v489
        %v492 = vunpack.c.l.s4 1966171168
        %v493 = vunpack.c.0.s8 %v492
        %v494 = vlaneseq
        %v495 = vshrl.u32 %v494, 7
        %v496 = vsub.s32 %v493, %v495
        %v497 = vrot.slane %v483, %v496
        %v498 = vcombine.high %v490, %v490
        %v499 = vcombine.high %v497, %v497
        %v501 = vunpack.c.l.s4 1966171168
        %v502 = vunpack.c.0.s8 %v501
        %v503 = vlaneseq
        %v504 = vshrl.u32 %v503, 7
        %v505 = vsub.s32 %v502, %v504
        %v506 = vrot.slane %v490, %v505
        %v508 = vunpack.c.l.s4 1966171168
        %v509 = vunpack.c.0.s8 %v508
        %v510 = vlaneseq
        %v511 = vshrl.u32 %v510, 7
        %v512 = vsub.s32 %v509, %v511
        %v513 = vrot.slane %v497, %v512
        %v515 = vunpack.c.l.s4 1966171168
        %v516 = vunpack.c.0.s8 %v515
        %v517 = vlaneseq
        %v518 = vshrl.u32 %v517, 7
        %v519 = vsub.s32 %v516, %v518
        %v520 = vrot.slane %v498, %v519
        %v522 = vunpack.c.l.s4 1966171168
        %v523 = vunpack.c.0.s8 %v522
        %v524 = vlaneseq
        %v525 = vshrl.u32 %v524, 7
        %v526 = vsub.s32 %v523, %v525
        %v527 = vrot.slane %v499, %v526
        %v528 = vcombine.high %v506, %v506
        %v529 = vcombine.high %v513, %v513
        %v530 = vcombine.high %v520, %v520
        %v531 = vcombine.high %v527, %v527
        %v532 = vlaneseq
        %v533 = vshrl.u32 %v532, 7
        %v534 = vsub.s32 0, %v533
        %v535 = vrot.slane %v506, %v534
        %v536 = vlaneseq
        %v537 = vshrl.u32 %v536, 7
        %v538 = vsub.s32 0, %v537
        %v539 = vrot.slane %v520, %v538
        %v540 = vlaneseq
        %v541 = vshrl.u32 %v540, 7
        %v542 = vsub.s32 0, %v541
        %v543 = vrot.slane %v528, %v542
        %v544 = vlaneseq
        %v545 = vshrl.u32 %v544, 7
        %v546 = vsub.s32 0, %v545
        %v547 = vrot.slane %v530, %v546
        %v548 = vlaneseq
        %v549 = vshrl.u32 %v548, 7
        %v550 = vsub.s32 0, %v549
        %v551 = vrot.slane %v513, %v550
        %v552 = vlaneseq
        %v553 = vshrl.u32 %v552, 7
        %v554 = vsub.s32 0, %v553
        %v555 = vrot.slane %v527, %v554
        %v556 = vlaneseq
        %v557 = vshrl.u32 %v556, 7
        %v558 = vsub.s32 0, %v557
        %v559 = vrot.slane %v529, %v558
        %v560 = vlaneseq
        %v561 = vshrl.u32 %v560, 7
        %v562 = vsub.s32 0, %v561
        %v563 = vrot.slane %v531, %v562
        %v572 = vmul.f32 %v535, %v424
        %v573 = vmul.f32 %v539, %v425
        %v574 = vmul.f32 %v543, %v426
        %v575 = vmul.f32 %v547, %v427
        %v576 = vmul.f32 %v551, %v428
        %v577 = vmul.f32 %v555, %v429
        %v578 = vmul.f32 %v559, %v430
        %v579 = vmul.f32 %v563, %v431
        %v580 = vlaneseq
        %v581 = vshrl.u32 %v580, 7
        %v582 = vsub.s32 0, %v581
        %v583 = vrot.slane %v456, %v582
        %v584 = vlaneseq
        %v585 = vshrl.u32 %v584, 7
        %v586 = vsub.s32 0, %v585
        %v587 = vrot.slane %v470, %v586
        %v588 = vlaneseq
        %v589 = vshrl.u32 %v588, 7
        %v590 = vsub.s32 0, %v589
        %v591 = vrot.slane %v478, %v590
        %v592 = vlaneseq
        %v593 = vshrl.u32 %v592, 7
        %v594 = vsub.s32 0, %v593
        %v595 = vrot.slane %v480, %v594
        %v596 = vlaneseq
        %v597 = vshrl.u32 %v596, 7
        %v598 = vsub.s32 0, %v597
        %v599 = vrot.slane %v463, %v598
        %v600 = vlaneseq
        %v601 = vshrl.u32 %v600, 7
        %v602 = vsub.s32 0, %v601
        %v603 = vrot.slane %v477, %v602
        %v604 = vlaneseq
        %v605 = vshrl.u32 %v604, 7
        %v606 = vsub.s32 0, %v605
        %v607 = vrot.slane %v479, %v606
        %v608 = vlaneseq
        %v609 = vshrl.u32 %v608, 7
        %v610 = vsub.s32 0, %v609
        %v611 = vrot.slane %v481, %v610
        %v620 = vadd.f32 %v583, %v572
        %v621 = vadd.f32 %v587, %v573
        %v622 = vadd.f32 %v591, %v574
        %v623 = vadd.f32 %v595, %v575
        %v624 = vadd.f32 %v599, %v576
        %v625 = vadd.f32 %v603, %v577
        %v626 = vadd.f32 %v607, %v578
        %v627 = vadd.f32 %v611, %v579
        %628 = vst [vmem:[%s292] sm:$0xff] %v620
        %629 = vst [vmem:[%s292 + $0x8] sm:$0xff] %v621
        %630 = vst [vmem:[%s292 + $0x10] sm:$0xff] %v622
        %631 = vst [vmem:[%s292 + $0x18] sm:$0xff] %v623
        %632 = vst [vmem:[%s292 + $0x20] sm:$0xff] %v624
        %633 = vst [vmem:[%s292 + $0x28] sm:$0xff] %v625
        %634 = vst [vmem:[%s292 + $0x30] sm:$0xff] %v626
        %635 = vst [vmem:[%s292 + $0x38] sm:$0xff] %v627
        %636 = vadd.xlane.f32.xlu0 %v419
        %v637 = vpop.xlane.xlu0 %636
        %v638 = vmul.f32 %v637, 0.5
        %v639 = vmul.f32 %v424, %v424
        %v640 = vmul.f32 %v425, %v425
        %v641 = vmul.f32 %v426, %v426
        %v642 = vmul.f32 %v427, %v427
        %v643 = vmul.f32 %v428, %v428
        %v644 = vmul.f32 %v429, %v429
        %v645 = vmul.f32 %v430, %v430
        %v646 = vmul.f32 %v431, %v431
        %647 = vadd.xlane.f32.xlu0 %v639
        %v648 = vpop.xlane.xlu0 %647
        %649 = vadd.xlane.f32.xlu0 %v640
        %v650 = vpop.xlane.xlu0 %649
        %651 = vadd.xlane.f32.xlu0 %v641
        %v652 = vpop.xlane.xlu0 %651
        %653 = vadd.xlane.f32.xlu0 %v642
        %v654 = vpop.xlane.xlu0 %653
        %655 = vadd.xlane.f32.xlu0 %v643
        %v656 = vpop.xlane.xlu0 %655
        %657 = vadd.xlane.f32.xlu0 %v644
        %v658 = vpop.xlane.xlu0 %657
        %659 = vadd.xlane.f32.xlu0 %v645
        %v660 = vpop.xlane.xlu0 %659
        %661 = vadd.xlane.f32.xlu0 %v646
        %v662 = vpop.xlane.xlu0 %661
        %v663 = vmul.f32 %v648, 0.5
        %v664 = vmul.f32 %v650, 0.5
        %v665 = vmul.f32 %v652, 0.5
        %v666 = vmul.f32 %v654, 0.5
        %v667 = vmul.f32 %v656, 0.5
        %v668 = vmul.f32 %v658, 0.5
        %v669 = vmul.f32 %v660, 0.5
        %v670 = vmul.f32 %v662, 0.5
        %v679 = vlaneseq
        %v680 = vand.u32 %v679, 127
        %v681 = vlaneseq
        %v682 = vshrl.u32 %v681, 7
        %v683 = vsub.s32 %v680, %v682
        %v684 = vrot.slane %v663, %v683
        %v685 = vlaneseq
        %v686 = vshrl.u32 %v685, 7
        %v687 = vsub.s32 %v680, %v686
        %v688 = vrot.slane %v664, %v687
        %v689 = vlaneseq
        %v690 = vshrl.u32 %v689, 7
        %v691 = vsub.s32 %v680, %v690
        %v692 = vrot.slane %v665, %v691
        %v693 = vlaneseq
        %v694 = vshrl.u32 %v693, 7
        %v695 = vsub.s32 %v680, %v694
        %v696 = vrot.slane %v666, %v695
        %v697 = vlaneseq
        %v698 = vshrl.u32 %v697, 7
        %v699 = vsub.s32 %v680, %v698
        %v700 = vrot.slane %v667, %v699
        %v701 = vlaneseq
        %v702 = vshrl.u32 %v701, 7
        %v703 = vsub.s32 %v680, %v702
        %v704 = vrot.slane %v668, %v703
        %v705 = vlaneseq
        %v706 = vshrl.u32 %v705, 7
        %v707 = vsub.s32 %v680, %v706
        %v708 = vrot.slane %v669, %v707
        %v709 = vlaneseq
        %v710 = vshrl.u32 %v709, 7
        %v711 = vsub.s32 %v680, %v710
        %v712 = vrot.slane %v670, %v711
        %vm713 = vcmask 1041409
        %v714 = vsel %vm713, %v688, %v684
        %vm715 = vcmask 1042434
        %v716 = vsel %vm715, %v692, %v714
        %vm717 = vcmask 1043459
        %v718 = vsel %vm717, %v696, %v716
        %vm719 = vcmask 1044484
        %v720 = vsel %vm719, %v700, %v718
        %vm721 = vcmask 1045509
        %v722 = vsel %vm721, %v704, %v720
        %vm723 = vcmask 1046534
        %v724 = vsel %vm723, %v708, %v722
        %vm725 = vcmask 1047559
        %v726 = vsel %vm725, %v712, %v724
        %v728 = vadd.f32 %v638, %v726
        %v729 = vsub.f32 -117.62413, %v728
        %vm730 = vcmask 64512
        %731 = vst.msk [vmem:[%s304] sm:$0xff] %vm730, %v729
        %s732 = sand.u32 %s126, 1
        %s733 = scalar_lea.sflag [#allocation4], %s732
        %s734 = sand.u32 %s126, 1
        %s735 = smul.addr %s734, 64
        %s736 = scalar_lea.vmem [#allocation8], %s735
        %p737 = scmp.lt.s32.totalorder %s24, 3
        %s738 = scalar_select %p737, %s24, 3
        %s739 = smul.addr %s738, 8
        %s740 = scalar_lea.vmem %s5, %s739
        // Predicated region
        $region49: #{tpu_custom_call.1} parent=35 // pred_check
          %p741 = pneg %p136
        $region50: #{tpu_custom_call.1} parent=35 // pred_check_branch
          %743 = sbr.rel (%p741) target = $region52
        $region51: #{tpu_custom_call.1} parent=35 // pred_region
          %s744 = smul.u32 8, %s24
          %s746 = ssub.s32 1024, 1024
          %747 = vsyncadd %s733, %s746
          %s748 = smul.addr %s744, 128
          %s749 = scalar_lea.hbm %s4, %s748
          %s750 = sshll.u32 %s736, 4
          %s751 = int_to_ptr.vmem [resolvable:$true] %s750
          %756 = dma.vmem_to_hbm [thread:$0]  %s751, 1024, %s749, %s733, 128, 128, 8
        $region52: #{tpu_custom_call.1} parent=35 // pred_fallthru
          _
        // Predicated region
        $region53: #{tpu_custom_call.1} parent=35 // pred_check
          %p757 = pneg %p162
        $region54: #{tpu_custom_call.1} parent=35 // pred_check_branch
          %759 = sbr.rel (%p757) target = $region56
        $region55: #{tpu_custom_call.1} parent=35 // pred_region
          _
        $region56: #{tpu_custom_call.1} parent=35 // pred_fallthru
          _
      $region36: #{tpu_custom_call.1} parent=5 // pred_fallthru
        _
      %p760 = scmp.le.s32.totalorder 2, %s19
      // Predicated region
      $region57: #{tpu_custom_call.1} parent=5 // pred_check
        %p761 = pneg %p760
      $region58: #{tpu_custom_call.1} parent=5 // pred_check_branch
        %763 = sbr.rel (%p761) target = $region60
      $region59: #{tpu_custom_call.1} parent=5 // pred_region
        %s764 = ssub.s32 %s19, 2
        // Predicated region
        $region61: #{tpu_custom_call.1} parent=59 // pred_check
          %p765 = pneg %p142
        $region62: #{tpu_custom_call.1} parent=59 // pred_check_branch
          %767 = sbr.rel (%p765) target = $region64
        $region63: #{tpu_custom_call.1} parent=59 // pred_region
          %s768 = sand.u32 %s127, 1
          %s769 = scalar_lea.sflag [#allocation4], %s768
          %s770 = sand.u32 %s127, 1
          %s771 = smul.addr %s770, 64
          %s772 = scalar_lea.vmem [#allocation8], %s771
          %773 = dma.done %s769, 1024
        $region64: #{tpu_custom_call.1} parent=59 // pred_fallthru
          _
        // Predicated region
        $region65: #{tpu_custom_call.1} parent=59 // pred_check
          %p774 = pneg %p168
        $region66: #{tpu_custom_call.1} parent=59 // pred_check_branch
          %776 = sbr.rel (%p774) target = $region68
        $region67: #{tpu_custom_call.1} parent=59 // pred_region
          %p777 = scmp.lt.s32.totalorder %s25, 3
          %s778 = scalar_select %p777, %s25, 3
          %s779 = smul.addr %s778, 8
          %s780 = scalar_lea.vmem %s5, %s779
        $region68: #{tpu_custom_call.1} parent=59 // pred_fallthru
          _
      $region60: #{tpu_custom_call.1} parent=5 // pred_fallthru
        _
    $region6: #{tpu_custom_call.1} parent=1 // loop_footer
      %s23 = sadd.s32 1, %s19
    $region7: #{tpu_custom_call.1} parent=1 // loop_footer_branch
      %18 = sbr.rel target = $region3
    $region8: #{tpu_custom_call.1} parent=1 // loop_exit
      _
    %781 = vsyncpa [#allocation3], 1
    %s782 = scalar_lea.sflag [#allocation3], 1
    %783 = vsyncpa %s782, 1
    %784 = vsyncpa [#allocation6], 1
    %785 = vsyncpa [#allocation4], 1
    %s786 = scalar_lea.sflag [#allocation4], 1
    %787 = vsyncpa %s786, 1

</llo_original>
